<compile_context>
chip_gen: v7x
topology: tpu7x:2x2x1
jax: 0.10.0
libtpu: 0.0.40
codegen_flags: <defaults>
</compile_context>

<pallas_src>
import jax
import jax.numpy as jnp
from jax.experimental import pallas as pl
from jax.experimental.pallas import tpu as pltpu

_LANES = 128
_SUBLANES = 8
_FOLD_ROWS = 256            # rows per in-kernel fold strip (multiple of 8)
_MIN_PALLAS_ELEMS = 32768   # below this, a plain XLA reduction is faster


def _round_up(x, m):
    return ((x + m - 1) // m) * m


def _default_num_partials():
    """2-way partial-sum axis only pays off on dual-TensorCore chips."""
    try:
        kind = jax.devices()[0].device_kind.lower()
    except Exception:
        return 1
    if any(tag in kind for tag in ("v4", "v5p", "v7")):
        return 2
    return 1


def _make_l1_kernel(t_rows, fold_rows, rows, tiles_per_core, need_mask):
    """Build the kernel body with trace-time constants baked in."""
    n_strips = t_rows // fold_rows

    def _accumulate(o_ref, t_ref, acc_ref, row0, masked):
        acc = acc_ref[...]
        for s in range(n_strips):
            r0 = s * fold_rows
            o_s = o_ref[r0:r0 + fold_rows, :].astype(jnp.float32)
            t_s = t_ref[r0:r0 + fold_rows, :].astype(jnp.float32)
            d = jnp.abs(o_s - t_s)
            if masked:
                # Zero rows past the end of the (rows, 128) slab; also zeroes
                # the whole duplicated (clamped) tile since its row0 >= rows.
                local = jax.lax.broadcasted_iota(jnp.int32, d.shape, 0)
                d = jnp.where((row0 + r0 + local) < rows, d, 0.0)
            acc = acc + d.reshape(fold_rows // _SUBLANES, _SUBLANES,
                                  _LANES).sum(axis=0)
        acc_ref[...] = acc

    def kernel(o_ref, t_ref, acc_ref):
        c = pl.program_id(0)          # partial-sum / core axis ("parallel")
        i = pl.program_id(1)          # reduction axis ("arbitrary")

        @pl.when(i == 0)
        def _():
            acc_ref[...] = jnp.zeros_like(acc_ref)

        tile_idx = c * tiles_per_core + i
        row0 = tile_idx * t_rows

        if not need_mask:
            _accumulate(o_ref, t_ref, acc_ref, row0, masked=False)
        else:
            is_full = (row0 + t_rows) <= rows

            @pl.when(is_full)
            def _():
                _accumulate(o_ref, t_ref, acc_ref, row0, masked=False)

            @pl.when(jnp.logical_not(is_full))
            def _():
                _accumulate(o_ref, t_ref, acc_ref, row0, masked=True)

    return kernel


def l1_loss(output, target, *, tile_rows=4096, num_partials=None):
    assert output.shape == target.shape, "output/target must match shapes"
    assert tile_rows % _SUBLANES == 0 and tile_rows >= _SUBLANES
    n_elems = output.size
    assert n_elems > 0
    out_dtype = jnp.result_type(output.dtype, target.dtype)

    # ---- Small-input fallback: launch overhead dwarfs the work. ----
    if n_elems < _MIN_PALLAS_ELEMS:
        mean = jnp.mean(jnp.abs(output.astype(jnp.float32)
                                - target.astype(jnp.float32)))
        return mean.astype(out_dtype)

    flat_o = output.reshape(-1)
    flat_t = target.reshape(-1)

    # ---- Split aligned prefix / tiny tail (no full-tensor pad copy). ----
    tail = n_elems % _LANES
    aligned = n_elems - tail
    tail_sum = None
    if tail:
        to = flat_o[aligned:].astype(jnp.float32)
        tt = flat_t[aligned:].astype(jnp.float32)
        tail_sum = jnp.sum(jnp.abs(to - tt))

    rows = aligned // _LANES
    o2d = flat_o[:aligned].reshape(rows, _LANES)
    t2d = flat_t[:aligned].reshape(rows, _LANES)

    t_rows = min(tile_rows, _round_up(rows, _SUBLANES))
    n_tiles = pl.cdiv(rows, t_rows)

    if num_partials is None:
        num_partials = _default_num_partials()
    num_partials = max(1, min(num_partials, n_tiles))
    tiles_per_core = pl.cdiv(n_tiles, num_partials)

    need_mask = (rows % t_rows != 0) or (tiles_per_core * num_partials != n_tiles)
    fold_rows = _FOLD_ROWS if (t_rows % _FOLD_ROWS == 0) else t_rows

    def in_map(c, i):
        # Clamp so the DMA block index always stays in-bounds; out-of-range
        # (duplicate) tiles are zeroed by the in-kernel row mask.
        return (jnp.minimum(c * tiles_per_core + i, n_tiles - 1), 0)

    kernel = _make_l1_kernel(t_rows, fold_rows, rows, tiles_per_core, need_mask)

    itemsize_sum = (jnp.dtype(output.dtype).itemsize
                    + jnp.dtype(target.dtype).itemsize)
    block_bytes = t_rows * _LANES * itemsize_sum          # one pipeline stage
    vmem_limit = max(32 << 20, 2 * block_bytes + (8 << 20))

    cost = pl.CostEstimate(
        flops=3 * aligned,  # sub + abs + add per element
        transcendentals=0,
        bytes_accessed=aligned * itemsize_sum
                       + num_partials * _SUBLANES * _LANES * 4,
    )

    partials = pl.pallas_call(
        kernel,
        out_shape=jax.ShapeDtypeStruct((num_partials * _SUBLANES, _LANES),
                                       jnp.float32),
        grid_spec=pltpu.PrefetchScalarGridSpec(
            num_scalar_prefetch=0,
            grid=(num_partials, tiles_per_core),
            in_specs=[
                pl.BlockSpec((t_rows, _LANES), in_map),
                pl.BlockSpec((t_rows, _LANES), in_map),
            ],
            out_specs=pl.BlockSpec((_SUBLANES, _LANES), lambda c, i: (c, 0)),
        ),
        compiler_params=pltpu.CompilerParams(
            dimension_semantics=("parallel", "arbitrary"),
            vmem_limit_bytes=vmem_limit,
        ),
        cost_estimate=cost,
    )(o2d, t2d)

    total = jnp.sum(partials)                   # single final reduce in XLA
    if tail_sum is not None:
        total = total + tail_sum
    mean = total / jnp.float32(n_elems)
    return mean.astype(out_dtype)


if __name__ == "__main__":
    key = jax.random.PRNGKey(0)

    def ref_l1(o, t):
        return jnp.mean(jnp.abs(o - t))

    # Case 1: tiny NCHW tensors (typical L1 usage) -> small-input fallback path.
    k1, k2, key = (*jax.random.split(key, 2), key)
    o1 = jax.random.normal(k1, (2, 4, 16, 16), dtype=jnp.float32)
    t1 = jax.random.normal(k2, (2, 4, 16, 16), dtype=jnp.float32)
    l1 = l1_loss(o1, t1)
    jax.block_until_ready(l1)
    assert jnp.allclose(l1, ref_l1(o1, t1), rtol=1e-5, atol=1e-5), "case1"

    # Case 2: non-128-aligned size -> Pallas kernel + tail path + ragged tile.
    k3, k4, key = (*jax.random.split(key, 2), key)
    o2 = jax.random.normal(k3, (2, 4, 81, 81), dtype=jnp.float32)
    t2 = jax.random.normal(k4, (2, 4, 81, 81), dtype=jnp.float32)
    l2 = l1_loss(o2, t2)
    jax.block_until_ready(l2)
    assert jnp.allclose(l2, ref_l1(o2, t2), rtol=1e-5, atol=1e-5), "case2"

    # Case 3: multi-tile grid with 2-way partial axis (fast + masked + duplicate
    # tile paths all exercised), small tile to keep shapes small.
    k5, k6, key = (*jax.random.split(key, 2), key)
    o3 = jax.random.normal(k5, (2, 4, 80, 80), dtype=jnp.float32)
    t3 = jax.random.normal(k6, (2, 4, 80, 80), dtype=jnp.float32)
    l3 = l1_loss(o3, t3, tile_rows=64, num_partials=2)
    jax.block_until_ready(l3)
    assert jnp.allclose(l3, ref_l1(o3, t3), rtol=1e-5, atol=1e-5), "case3"

    print("KERNEL_OK")
</pallas_src>

<mosaic_0001>
module attributes {stable_mosaic.version = 11 : i64} {
  func.func @kernel(%arg0: i32, %arg1: i32, %arg2: memref<416x128xf32, #tpu.memory_space<vmem>>, %arg3: memref<416x128xf32, #tpu.memory_space<vmem>>, %arg4: memref<8x128xf32, #tpu.memory_space<vmem>>) attributes {dimension_semantics = [#tpu.dimension_semantics<parallel>, #tpu.dimension_semantics<arbitrary>], iteration_bounds = array<i64: 1, 1>, scalar_prefetch = 0 : i64, scratch_operands = 0 : i64, tpu.core_type = #tpu.core_type<tc>, window_params = [{transform_indices = @transform_0, window_bounds = array<i64: 416, 128>}, {transform_indices = @transform_1, window_bounds = array<i64: 416, 128>}, {transform_indices = @transform_2, window_bounds = array<i64: 8, 128>}]} {
    %c0_i32 = arith.constant 0 : i32
    %0 = arith.cmpi eq, %arg1, %c0_i32 : i32
    %1 = arith.extui %0 : i1 to i32
    %c0_i32_0 = arith.constant 0 : i32
    %2 = arith.cmpi ne, %1, %c0_i32_0 : i32
    scf.if %2 {
      %cst = arith.constant 0.000000e+00 : f32
      %13 = vector.broadcast %cst : f32 to vector<8x128xf32>
      %c0 = arith.constant 0 : index
      %c0_4 = arith.constant 0 : index
      %14 = vector.load %arg4[%c0, %c0_4] : memref<8x128xf32, #tpu.memory_space<vmem>>, vector<8x128xf32>
      tpu.vector_store %arg4[%c0, %c0_4], %13 {strides = array<i32>} : memref<8x128xf32, #tpu.memory_space<vmem>>, vector<8x128xf32>,
    } else {
    }
    %c1_i32 = arith.constant 1 : i32
    %3 = arith.muli %arg0, %c1_i32 : i32
    %4 = arith.addi %3, %arg1 : i32
    %c416_i32 = arith.constant 416 : i32
    %5 = arith.muli %4, %c416_i32 : i32
    %c416_i32_1 = arith.constant 416 : i32
    %6 = arith.addi %5, %c416_i32_1 : i32
    %c410_i32 = arith.constant 410 : i32
    %7 = arith.cmpi sle, %6, %c410_i32 : i32
    %8 = arith.extui %7 : i1 to i32
    %c0_i32_2 = arith.constant 0 : i32
    %9 = arith.cmpi ne, %8, %c0_i32_2 : i32
    scf.if %9 {
      %c0 = arith.constant 0 : index
      %c0_4 = arith.constant 0 : index
      %13 = vector.load %arg4[%c0, %c0_4] : memref<8x128xf32, #tpu.memory_space<vmem>>, vector<8x128xf32>
      %c0_5 = arith.constant 0 : index
      %c0_6 = arith.constant 0 : index
      %14 = vector.load %arg2[%c0_5, %c0_6] : memref<416x128xf32, #tpu.memory_space<vmem>>, vector<416x128xf32>
      %c0_7 = arith.constant 0 : index
      %c0_8 = arith.constant 0 : index
      %15 = vector.load %arg3[%c0_7, %c0_8] : memref<416x128xf32, #tpu.memory_space<vmem>>, vector<416x128xf32>
      %16 = arith.subf %14, %15 : vector<416x128xf32>
      %17 = math.absf %16 : vector<416x128xf32>
      %18 = vector.shape_cast %17 : vector<416x128xf32> to vector<52x8x128xf32>
      %cst = arith.constant dense<0.000000e+00> : vector<8x128xf32>
      %19 = vector.multi_reduction <add>, %18, %cst [0] : vector<52x8x128xf32> to vector<8x128xf32>
      %20 = arith.addf %13, %19 : vector<8x128xf32>
      %c0_9 = arith.constant 0 : index
      %c0_10 = arith.constant 0 : index
      %21 = vector.load %arg4[%c0_9, %c0_10] : memref<8x128xf32, #tpu.memory_space<vmem>>, vector<8x128xf32>
      tpu.vector_store %arg4[%c0_9, %c0_10], %20 {strides = array<i32>} : memref<8x128xf32, #tpu.memory_space<vmem>>, vector<8x128xf32>,
    } else {
    }
    %true = arith.constant true
    %10 = arith.xori %7, %true : i1
    %11 = arith.extui %10 : i1 to i32
    %c0_i32_3 = arith.constant 0 : i32
    %12 = arith.cmpi ne, %11, %c0_i32_3 : i32
    scf.if %12 {
      %c0 = arith.constant 0 : index
      %c0_4 = arith.constant 0 : index
      %13 = vector.load %arg4[%c0, %c0_4] : memref<8x128xf32, #tpu.memory_space<vmem>>, vector<8x128xf32>
      %c0_5 = arith.constant 0 : index
      %c0_6 = arith.constant 0 : index
      %14 = vector.load %arg2[%c0_5, %c0_6] : memref<416x128xf32, #tpu.memory_space<vmem>>, vector<416x128xf32>
      %c0_7 = arith.constant 0 : index
      %c0_8 = arith.constant 0 : index
      %15 = vector.load %arg3[%c0_7, %c0_8] : memref<416x128xf32, #tpu.memory_space<vmem>>, vector<416x128xf32>
      %16 = arith.subf %14, %15 : vector<416x128xf32>
      %17 = math.absf %16 : vector<416x128xf32>
      %18 = tpu.iota {dimensions = array<i32: 0>} : vector<416x128xi32>
      %c0_i32_9 = arith.constant 0 : i32
      %19 = arith.addi %5, %c0_i32_9 : i32
      %20 = vector.broadcast %19 : i32 to vector<416x128xi32>
      %21 = arith.addi %20, %18 : vector<416x128xi32>
      %c410_i32_10 = arith.constant 410 : i32
      %22 = vector.broadcast %c410_i32_10 : i32 to vector<416x128xi32>
      %23 = arith.cmpi slt, %21, %22 : vector<416x128xi32>
      %cst = arith.constant 0.000000e+00 : f32
      %24 = vector.broadcast %cst : f32 to vector<416x128xf32>
      %25 = arith.select %23, %17, %24 : vector<416x128xi1>, vector<416x128xf32>
      %26 = vector.shape_cast %25 : vector<416x128xf32> to vector<52x8x128xf32>
      %cst_11 = arith.constant dense<0.000000e+00> : vector<8x128xf32>
      %27 = vector.multi_reduction <add>, %26, %cst_11 [0] : vector<52x8x128xf32> to vector<8x128xf32>
      %28 = arith.addf %13, %27 : vector<8x128xf32>
      %c0_12 = arith.constant 0 : index
      %c0_13 = arith.constant 0 : index
      %29 = vector.load %arg4[%c0_12, %c0_13] : memref<8x128xf32, #tpu.memory_space<vmem>>, vector<8x128xf32>
      tpu.vector_store %arg4[%c0_12, %c0_13], %28 {strides = array<i32>} : memref<8x128xf32, #tpu.memory_space<vmem>>, vector<8x128xf32>,
    } else {
    }
    return
  }
  func.func @transform_0(%arg0: i32, %arg1: i32) -> (i32, i32) {
    %c1_i32 = arith.constant 1 : i32
    %0 = arith.muli %arg0, %c1_i32 : i32
    %1 = arith.addi %0, %arg1 : i32
    %c0_i32 = arith.constant 0 : i32
    %2 = arith.minsi %1, %c0_i32 : i32
    %c0_i32_0 = arith.constant 0 : i32
    %c0_i32_1 = arith.constant 0 : i32
    return %2, %c0_i32_0 : i32, i32
  }
  func.func @transform_1(%arg0: i32, %arg1: i32) -> (i32, i32) {
    %c1_i32 = arith.constant 1 : i32
    %0 = arith.muli %arg0, %c1_i32 : i32
    %1 = arith.addi %0, %arg1 : i32
    %c0_i32 = arith.constant 0 : i32
    %2 = arith.minsi %1, %c0_i32 : i32
    %c0_i32_0 = arith.constant 0 : i32
    %c0_i32_1 = arith.constant 0 : i32
    return %2, %c0_i32_0 : i32, i32
  }
  func.func @transform_2(%arg0: i32, %arg1: i32) -> (i32, i32) {
    %c0_i32 = arith.constant 0 : i32
    %c0_i32_0 = arith.constant 0 : i32
    return %arg0, %c0_i32 : i32, i32
  }
}

</mosaic_0001>

<llo_original>
// kernel: tpu_custom_call.1
$region0: #{tpu_custom_call.1}
  #allocation0 [shape = 'u32[]', space=smem, size = 0x4, offset = 0x4, fixed_abs, tag = 'smem constant byte address 0x4 - core index']
  #allocation1 [shape = 'u32[144,128]{1,0:T(1,128)}', space=vmem, size = 0x12000, scoped, tag = 'internal scratch']
  %s0 = inlined_call_operand.hbm [shape: f32[410,128], index: 0, kind: input, shape index: {}]
  %s1 = inlined_call_operand.hbm [shape: f32[410,128], index: 1, kind: input, shape index: {}]
  %s2 = inlined_call_operand.hbm [shape: f32[8,128], index: 2, kind: output, shape index: {}]
  %s3 = sld [smem:[#allocation0]]
  $region38: #{tpu_custom_call.1} parent=0
    _
  %s5 = ssub.s32 1, %s3
  %s6 = scalar_select 0, %s5, %s3
  $region1: #{tpu_custom_call.1} parent=0
    #allocation2 [shape = 'u8[212992]{0}', space=vmem, size = 0x34000, scoped, tag = 'input window, operand 0, single buffered']
    #allocation3 [shape = 's32[1]{0}', space=sflag, size = 0x4, scoped, tag = 'scoped memory for tpu_custom_call.1']
    #allocation4 [shape = 's32[1]{0}', space=sflag, size = 0x4, scoped, tag = 'scoped memory for tpu_custom_call.1']
    #allocation5 [shape = 'u8[212992]{0}', space=vmem, size = 0x34000, scoped, tag = 'input window, operand 1, single buffered']
    #allocation6 [shape = 's32[1]{0}', space=sflag, size = 0x4, scoped, tag = 'scoped memory for tpu_custom_call.1']
    #allocation7 [shape = 'u8[4096]{0}', space=vmem, size = 0x1000, scoped, tag = 'output window, operand 0, single buffered']
    %7 = vsyncpa [#allocation3], 0
    %8 = vsyncpa [#allocation6], 0
    %9 = vsyncpa [#allocation4], 0
    // Predicated region
    $region2: #{tpu_custom_call.1} parent=1 // pred_check
      _
    $region3: #{tpu_custom_call.1} parent=1 // pred_check_branch
      %11 = sbr.rel (0) target = $region5
    $region4: #{tpu_custom_call.1} parent=1 // pred_region
      %s12 = sadd.s32 0, 0
      %p13 = scmp.lt.s32.totalorder %s12, 0
      %s14 = scalar_select %p13, %s12, 0
      %s15 = smul.u32 52, %s14
      %s17 = ssub.s32 6656, 6656
      %18 = vsyncadd [#allocation3], %s17
      %s19 = smul.addr %s15, 128
      %s20 = scalar_lea.hbm %s0, %s19
      %s21 = sshll.u32 [#allocation2], 4
      %s22 = int_to_ptr.vmem [resolvable:$true] %s21
      %27 = dma.hbm_to_vmem [thread:$0]  %s20, 6656, %s22, [#allocation3], 128, 128, 8
    $region5: #{tpu_custom_call.1} parent=1 // pred_fallthru
      _
    // Predicated region
    $region6: #{tpu_custom_call.1} parent=1 // pred_check
      _
    $region7: #{tpu_custom_call.1} parent=1 // pred_check_branch
      %29 = sbr.rel (0) target = $region9
    $region8: #{tpu_custom_call.1} parent=1 // pred_region
      %s30 = sadd.s32 0, 0
      %p31 = scmp.lt.s32.totalorder %s30, 0
      %s32 = scalar_select %p31, %s30, 0
      %s33 = smul.u32 52, %s32
      %s35 = ssub.s32 6656, 6656
      %36 = vsyncadd [#allocation6], %s35
      %s37 = smul.addr %s33, 128
      %s38 = scalar_lea.hbm %s1, %s37
      %s39 = sshll.u32 [#allocation5], 4
      %s40 = int_to_ptr.vmem [resolvable:$true] %s39
      %45 = dma.hbm_to_vmem [thread:$0]  %s38, 6656, %s40, [#allocation6], 128, 128, 8
    $region9: #{tpu_custom_call.1} parent=1 // pred_fallthru
      _
    // Predicated region
    $region10: #{tpu_custom_call.1} parent=1 // pred_check
      _
    $region11: #{tpu_custom_call.1} parent=1 // pred_check_branch
      %47 = sbr.rel (0) target = $region13
    $region12: #{tpu_custom_call.1} parent=1 // pred_region
      %48 = dma.done [#allocation3], 6656
    $region13: #{tpu_custom_call.1} parent=1 // pred_fallthru
      _
    // Predicated region
    $region14: #{tpu_custom_call.1} parent=1 // pred_check
      _
    $region15: #{tpu_custom_call.1} parent=1 // pred_check_branch
      %50 = sbr.rel (0) target = $region17
    $region16: #{tpu_custom_call.1} parent=1 // pred_region
      %51 = dma.done [#allocation6], 6656
    $region17: #{tpu_custom_call.1} parent=1 // pred_fallthru
      _
    %s52 = sadd.s32 0, 0
    %p53 = scmp.lt.s32.totalorder %s52, 0
    %s54 = scalar_select %p53, %s52, 0
    %s55 = smul.u32 52, %s54
    %s56 = sadd.s32 0, 0
    %p57 = scmp.lt.s32.totalorder %s56, 0
    %s58 = scalar_select %p57, %s56, 0
    %s59 = smul.u32 52, %s58
    %p60 = scmp.eq.s32.totalorder 0, 0
    // Predicated region
    $region18: #{tpu_custom_call.1} parent=1 // pred_check
      %p61 = pneg %p60
    $region19: #{tpu_custom_call.1} parent=1 // pred_check_branch
      %63 = sbr.rel (%p61) target = $region21
    $region20: #{tpu_custom_call.1} parent=1 // pred_region
      %64 = vst [vmem:[#allocation7] sm:$0xff] 0.0
    $region21: #{tpu_custom_call.1} parent=1 // pred_fallthru
      _
    %s65 = sadd.s32 0, 0
    %s66 = smul.u32 %s65, 416
    %s67 = sadd.s32 %s66, 416
    %p68 = scmp.le.s32.totalorder %s67, 410
    // Predicated region
    $region22: #{tpu_custom_call.1} parent=1 // pred_check
      %p69 = pneg %p68
    $region23: #{tpu_custom_call.1} parent=1 // pred_check_branch
      %71 = sbr.rel (%p69) target = $region25
    $region24: #{tpu_custom_call.1} parent=1 // pred_region
      %v72 = vld [vmem:[#allocation7] sm:$0xff]
      %v73 = vld [vmem:[#allocation2] sm:$0xff]
      %v74 = vld [vmem:[#allocation2 + $0x8] sm:$0xff]
      %v75 = vld [vmem:[#allocation2 + $0x10] sm:$0xff]
      %v76 = vld [vmem:[#allocation2 + $0x18] sm:$0xff]
      %v77 = vld [vmem:[#allocation2 + $0x20] sm:$0xff]
      %v78 = vld [vmem:[#allocation2 + $0x28] sm:$0xff]
      %v79 = vld [vmem:[#allocation2 + $0x30] sm:$0xff]
      %v80 = vld [vmem:[#allocation2 + $0x38] sm:$0xff]
      %v81 = vld [vmem:[#allocation2 + $0x40] sm:$0xff]
      %v82 = vld [vmem:[#allocation2 + $0x48] sm:$0xff]
      %v83 = vld [vmem:[#allocation2 + $0x50] sm:$0xff]
      %v84 = vld [vmem:[#allocation2 + $0x58] sm:$0xff]
      %v85 = vld [vmem:[#allocation2 + $0x60] sm:$0xff]
      %v86 = vld [vmem:[#allocation2 + $0x68] sm:$0xff]
      %v87 = vld [vmem:[#allocation2 + $0x70] sm:$0xff]
      %v88 = vld [vmem:[#allocation2 + $0x78] sm:$0xff]
      %v89 = vld [vmem:[#allocation2 + $0x80] sm:$0xff]
      %v90 = vld [vmem:[#allocation2 + $0x88] sm:$0xff]
      %v91 = vld [vmem:[#allocation2 + $0x90] sm:$0xff]
      %v92 = vld [vmem:[#allocation2 + $0x98] sm:$0xff]
      %v93 = vld [vmem:[#allocation2 + $0xa0] sm:$0xff]
      %v94 = vld [vmem:[#allocation2 + $0xa8] sm:$0xff]
      %v95 = vld [vmem:[#allocation2 + $0xb0] sm:$0xff]
      %v96 = vld [vmem:[#allocation2 + $0xb8] sm:$0xff]
      %v97 = vld [vmem:[#allocation2 + $0xc0] sm:$0xff]
      %v98 = vld [vmem:[#allocation2 + $0xc8] sm:$0xff]
      %v99 = vld [vmem:[#allocation2 + $0xd0] sm:$0xff]
      %v100 = vld [vmem:[#allocation2 + $0xd8] sm:$0xff]
      %v101 = vld [vmem:[#allocation2 + $0xe0] sm:$0xff]
      %v102 = vld [vmem:[#allocation2 + $0xe8] sm:$0xff]
      %v103 = vld [vmem:[#allocation2 + $0xf0] sm:$0xff]
      %v104 = vld [vmem:[#allocation2 + $0xf8] sm:$0xff]
      %v105 = vld [vmem:[#allocation2 + $0x100] sm:$0xff]
      %v106 = vld [vmem:[#allocation2 + $0x108] sm:$0xff]
      %v107 = vld [vmem:[#allocation2 + $0x110] sm:$0xff]
      %v108 = vld [vmem:[#allocation2 + $0x118] sm:$0xff]
      %v109 = vld [vmem:[#allocation2 + $0x120] sm:$0xff]
      %v110 = vld [vmem:[#allocation2 + $0x128] sm:$0xff]
      %v111 = vld [vmem:[#allocation2 + $0x130] sm:$0xff]
      %v112 = vld [vmem:[#allocation2 + $0x138] sm:$0xff]
      %v113 = vld [vmem:[#allocation2 + $0x140] sm:$0xff]
      %v114 = vld [vmem:[#allocation2 + $0x148] sm:$0xff]
      %v115 = vld [vmem:[#allocation2 + $0x150] sm:$0xff]
      %v116 = vld [vmem:[#allocation2 + $0x158] sm:$0xff]
      %v117 = vld [vmem:[#allocation2 + $0x160] sm:$0xff]
      %v118 = vld [vmem:[#allocation2 + $0x168] sm:$0xff]
      %v119 = vld [vmem:[#allocation2 + $0x170] sm:$0xff]
      %v120 = vld [vmem:[#allocation2 + $0x178] sm:$0xff]
      %v121 = vld [vmem:[#allocation2 + $0x180] sm:$0xff]
      %v122 = vld [vmem:[#allocation2 + $0x188] sm:$0xff]
      %v123 = vld [vmem:[#allocation2 + $0x190] sm:$0xff]
      %v124 = vld [vmem:[#allocation2 + $0x198] sm:$0xff]
      %v125 = vld [vmem:[#allocation5] sm:$0xff]
      %v126 = vld [vmem:[#allocation5 + $0x8] sm:$0xff]
      %v127 = vld [vmem:[#allocation5 + $0x10] sm:$0xff]
      %v128 = vld [vmem:[#allocation5 + $0x18] sm:$0xff]
      %v129 = vld [vmem:[#allocation5 + $0x20] sm:$0xff]
      %v130 = vld [vmem:[#allocation5 + $0x28] sm:$0xff]
      %v131 = vld [vmem:[#allocation5 + $0x30] sm:$0xff]
      %v132 = vld [vmem:[#allocation5 + $0x38] sm:$0xff]
      %v133 = vld [vmem:[#allocation5 + $0x40] sm:$0xff]
      %v134 = vld [vmem:[#allocation5 + $0x48] sm:$0xff]
      %v135 = vld [vmem:[#allocation5 + $0x50] sm:$0xff]
      %v136 = vld [vmem:[#allocation5 + $0x58] sm:$0xff]
      %v137 = vld [vmem:[#allocation5 + $0x60] sm:$0xff]
      %v138 = vld [vmem:[#allocation5 + $0x68] sm:$0xff]
      %v139 = vld [vmem:[#allocation5 + $0x70] sm:$0xff]
      %v140 = vld [vmem:[#allocation5 + $0x78] sm:$0xff]
      %v141 = vld [vmem:[#allocation5 + $0x80] sm:$0xff]
      %v142 = vld [vmem:[#allocation5 + $0x88] sm:$0xff]
      %v143 = vld [vmem:[#allocation5 + $0x90] sm:$0xff]
      %v144 = vld [vmem:[#allocation5 + $0x98] sm:$0xff]
      %v145 = vld [vmem:[#allocation5 + $0xa0] sm:$0xff]
      %v146 = vld [vmem:[#allocation5 + $0xa8] sm:$0xff]
      %v147 = vld [vmem:[#allocation5 + $0xb0] sm:$0xff]
      %v148 = vld [vmem:[#allocation5 + $0xb8] sm:$0xff]
      %v149 = vld [vmem:[#allocation5 + $0xc0] sm:$0xff]
      %v150 = vld [vmem:[#allocation5 + $0xc8] sm:$0xff]
      %v151 = vld [vmem:[#allocation5 + $0xd0] sm:$0xff]
      %v152 = vld [vmem:[#allocation5 + $0xd8] sm:$0xff]
      %v153 = vld [vmem:[#allocation5 + $0xe0] sm:$0xff]
      %v154 = vld [vmem:[#allocation5 + $0xe8] sm:$0xff]
      %v155 = vld [vmem:[#allocation5 + $0xf0] sm:$0xff]
      %v156 = vld [vmem:[#allocation5 + $0xf8] sm:$0xff]
      %v157 = vld [vmem:[#allocation5 + $0x100] sm:$0xff]
      %v158 = vld [vmem:[#allocation5 + $0x108] sm:$0xff]
      %v159 = vld [vmem:[#allocation5 + $0x110] sm:$0xff]
      %v160 = vld [vmem:[#allocation5 + $0x118] sm:$0xff]
      %v161 = vld [vmem:[#allocation5 + $0x120] sm:$0xff]
      %v162 = vld [vmem:[#allocation5 + $0x128] sm:$0xff]
      %v163 = vld [vmem:[#allocation5 + $0x130] sm:$0xff]
      %v164 = vld [vmem:[#allocation5 + $0x138] sm:$0xff]
      %v165 = vld [vmem:[#allocation5 + $0x140] sm:$0xff]
      %v166 = vld [vmem:[#allocation5 + $0x148] sm:$0xff]
      %v167 = vld [vmem:[#allocation5 + $0x150] sm:$0xff]
      %v168 = vld [vmem:[#allocation5 + $0x158] sm:$0xff]
      %v169 = vld [vmem:[#allocation5 + $0x160] sm:$0xff]
      %v170 = vld [vmem:[#allocation5 + $0x168] sm:$0xff]
      %v171 = vld [vmem:[#allocation5 + $0x170] sm:$0xff]
      %v172 = vld [vmem:[#allocation5 + $0x178] sm:$0xff]
      %v173 = vld [vmem:[#allocation5 + $0x180] sm:$0xff]
      %v174 = vld [vmem:[#allocation5 + $0x188] sm:$0xff]
      %v175 = vld [vmem:[#allocation5 + $0x190] sm:$0xff]
      %v176 = vld [vmem:[#allocation5 + $0x198] sm:$0xff]
      %v177 = vsub.f32 %v73, %v125
      %v178 = vsub.f32 %v74, %v126
      %v179 = vsub.f32 %v75, %v127
      %v180 = vsub.f32 %v76, %v128
      %v181 = vsub.f32 %v77, %v129
      %v182 = vsub.f32 %v78, %v130
      %v183 = vsub.f32 %v79, %v131
      %v184 = vsub.f32 %v80, %v132
      %v185 = vsub.f32 %v81, %v133
      %v186 = vsub.f32 %v82, %v134
      %v187 = vsub.f32 %v83, %v135
      %v188 = vsub.f32 %v84, %v136
      %v189 = vsub.f32 %v85, %v137
      %v190 = vsub.f32 %v86, %v138
      %v191 = vsub.f32 %v87, %v139
      %v192 = vsub.f32 %v88, %v140
      %v193 = vsub.f32 %v89, %v141
      %v194 = vsub.f32 %v90, %v142
      %v195 = vsub.f32 %v91, %v143
      %v196 = vsub.f32 %v92, %v144
      %v197 = vsub.f32 %v93, %v145
      %v198 = vsub.f32 %v94, %v146
      %v199 = vsub.f32 %v95, %v147
      %v200 = vsub.f32 %v96, %v148
      %v201 = vsub.f32 %v97, %v149
      %v202 = vsub.f32 %v98, %v150
      %v203 = vsub.f32 %v99, %v151
      %v204 = vsub.f32 %v100, %v152
      %v205 = vsub.f32 %v101, %v153
      %v206 = vsub.f32 %v102, %v154
      %v207 = vsub.f32 %v103, %v155
      %v208 = vsub.f32 %v104, %v156
      %v209 = vsub.f32 %v105, %v157
      %v210 = vsub.f32 %v106, %v158
      %v211 = vsub.f32 %v107, %v159
      %v212 = vsub.f32 %v108, %v160
      %v213 = vsub.f32 %v109, %v161
      %v214 = vsub.f32 %v110, %v162
      %v215 = vsub.f32 %v111, %v163
      %v216 = vsub.f32 %v112, %v164
      %v217 = vsub.f32 %v113, %v165
      %v218 = vsub.f32 %v114, %v166
      %v219 = vsub.f32 %v115, %v167
      %v220 = vsub.f32 %v116, %v168
      %v221 = vsub.f32 %v117, %v169
      %v222 = vsub.f32 %v118, %v170
      %v223 = vsub.f32 %v119, %v171
      %v224 = vsub.f32 %v120, %v172
      %v225 = vsub.f32 %v121, %v173
      %v226 = vsub.f32 %v122, %v174
      %v227 = vsub.f32 %v123, %v175
      %v228 = vsub.f32 %v124, %v176
      %v229 = vand.u32 2147483647, %v177
      %v230 = vand.u32 2147483647, %v178
      %v231 = vand.u32 2147483647, %v179
      %v232 = vand.u32 2147483647, %v180
      %v233 = vand.u32 2147483647, %v181
      %v234 = vand.u32 2147483647, %v182
      %v235 = vand.u32 2147483647, %v183
      %v236 = vand.u32 2147483647, %v184
      %v237 = vand.u32 2147483647, %v185
      %v238 = vand.u32 2147483647, %v186
      %v239 = vand.u32 2147483647, %v187
      %v240 = vand.u32 2147483647, %v188
      %v241 = vand.u32 2147483647, %v189
      %v242 = vand.u32 2147483647, %v190
      %v243 = vand.u32 2147483647, %v191
      %v244 = vand.u32 2147483647, %v192
      %v245 = vand.u32 2147483647, %v193
      %v246 = vand.u32 2147483647, %v194
      %v247 = vand.u32 2147483647, %v195
      %v248 = vand.u32 2147483647, %v196
      %v249 = vand.u32 2147483647, %v197
      %v250 = vand.u32 2147483647, %v198
      %v251 = vand.u32 2147483647, %v199
      %v252 = vand.u32 2147483647, %v200
      %v253 = vand.u32 2147483647, %v201
      %v254 = vand.u32 2147483647, %v202
      %v255 = vand.u32 2147483647, %v203
      %v256 = vand.u32 2147483647, %v204
      %v257 = vand.u32 2147483647, %v205
      %v258 = vand.u32 2147483647, %v206
      %v259 = vand.u32 2147483647, %v207
      %v260 = vand.u32 2147483647, %v208
      %v261 = vand.u32 2147483647, %v209
      %v262 = vand.u32 2147483647, %v210
      %v263 = vand.u32 2147483647, %v211
      %v264 = vand.u32 2147483647, %v212
      %v265 = vand.u32 2147483647, %v213
      %v266 = vand.u32 2147483647, %v214
      %v267 = vand.u32 2147483647, %v215
      %v268 = vand.u32 2147483647, %v216
      %v269 = vand.u32 2147483647, %v217
      %v270 = vand.u32 2147483647, %v218
      %v271 = vand.u32 2147483647, %v219
      %v272 = vand.u32 2147483647, %v220
      %v273 = vand.u32 2147483647, %v221
      %v274 = vand.u32 2147483647, %v222
      %v275 = vand.u32 2147483647, %v223
      %v276 = vand.u32 2147483647, %v224
      %v277 = vand.u32 2147483647, %v225
      %v278 = vand.u32 2147483647, %v226
      %v279 = vand.u32 2147483647, %v227
      %v280 = vand.u32 2147483647, %v228
      %v281 = vadd.f32 %v229, %v230
      %v282 = vadd.f32 %v281, %v231
      %v283 = vadd.f32 %v282, %v232
      %v284 = vadd.f32 %v283, %v233
      %v285 = vadd.f32 %v284, %v234
      %v286 = vadd.f32 %v285, %v235
      %v287 = vadd.f32 %v286, %v236
      %v288 = vadd.f32 %v287, %v237
      %v289 = vadd.f32 %v288, %v238
      %v290 = vadd.f32 %v289, %v239
      %v291 = vadd.f32 %v290, %v240
      %v292 = vadd.f32 %v291, %v241
      %v293 = vadd.f32 %v292, %v242
      %v294 = vadd.f32 %v293, %v243
      %v295 = vadd.f32 %v294, %v244
      %v296 = vadd.f32 %v295, %v245
      %v297 = vadd.f32 %v296, %v246
      %v298 = vadd.f32 %v297, %v247
      %v299 = vadd.f32 %v298, %v248
      %v300 = vadd.f32 %v299, %v249
      %v301 = vadd.f32 %v300, %v250
      %v302 = vadd.f32 %v301, %v251
      %v303 = vadd.f32 %v302, %v252
      %v304 = vadd.f32 %v303, %v253
      %v305 = vadd.f32 %v304, %v254
      %v306 = vadd.f32 %v305, %v255
      %v307 = vadd.f32 %v306, %v256
      %v308 = vadd.f32 %v307, %v257
      %v309 = vadd.f32 %v308, %v258
      %v310 = vadd.f32 %v309, %v259
      %v311 = vadd.f32 %v310, %v260
      %v312 = vadd.f32 %v311, %v261
      %v313 = vadd.f32 %v312, %v262
      %v314 = vadd.f32 %v313, %v263
      %v315 = vadd.f32 %v314, %v264
      %v316 = vadd.f32 %v315, %v265
      %v317 = vadd.f32 %v316, %v266
      %v318 = vadd.f32 %v317, %v267
      %v319 = vadd.f32 %v318, %v268
      %v320 = vadd.f32 %v319, %v269
      %v321 = vadd.f32 %v320, %v270
      %v322 = vadd.f32 %v321, %v271
      %v323 = vadd.f32 %v322, %v272
      %v324 = vadd.f32 %v323, %v273
      %v325 = vadd.f32 %v324, %v274
      %v326 = vadd.f32 %v325, %v275
      %v327 = vadd.f32 %v326, %v276
      %v328 = vadd.f32 %v327, %v277
      %v329 = vadd.f32 %v328, %v278
      %v330 = vadd.f32 %v329, %v279
      %v331 = vadd.f32 %v330, %v280
      %v332 = vadd.f32 %v72, %v331
      %333 = vst [vmem:[#allocation7] sm:$0xff] %v332
    $region25: #{tpu_custom_call.1} parent=1 // pred_fallthru
      _
    %p334 = scmp.gt.s32.totalorder %s67, 410
    // Predicated region
    $region26: #{tpu_custom_call.1} parent=1 // pred_check
      %p335 = pneg %p334
    $region27: #{tpu_custom_call.1} parent=1 // pred_check_branch
      %337 = sbr.rel (%p335) target = $region29
    $region28: #{tpu_custom_call.1} parent=1 // pred_region
      %v338 = vld [vmem:[#allocation7] sm:$0xff]
      %v339 = vld [vmem:[#allocation2] sm:$0xff]
      %v340 = vld [vmem:[#allocation2 + $0x8] sm:$0xff]
      %v341 = vld [vmem:[#allocation2 + $0x10] sm:$0xff]
      %v342 = vld [vmem:[#allocation2 + $0x18] sm:$0xff]
      %v343 = vld [vmem:[#allocation2 + $0x20] sm:$0xff]
      %v344 = vld [vmem:[#allocation2 + $0x28] sm:$0xff]
      %v345 = vld [vmem:[#allocation2 + $0x30] sm:$0xff]
      %v346 = vld [vmem:[#allocation2 + $0x38] sm:$0xff]
      %v347 = vld [vmem:[#allocation2 + $0x40] sm:$0xff]
      %v348 = vld [vmem:[#allocation2 + $0x48] sm:$0xff]
      %v349 = vld [vmem:[#allocation2 + $0x50] sm:$0xff]
      %v350 = vld [vmem:[#allocation2 + $0x58] sm:$0xff]
      %v351 = vld [vmem:[#allocation2 + $0x60] sm:$0xff]
      %v352 = vld [vmem:[#allocation2 + $0x68] sm:$0xff]
      %v353 = vld [vmem:[#allocation2 + $0x70] sm:$0xff]
      %v354 = vld [vmem:[#allocation2 + $0x78] sm:$0xff]
      %v355 = vld [vmem:[#allocation2 + $0x80] sm:$0xff]
      %v356 = vld [vmem:[#allocation2 + $0x88] sm:$0xff]
      %v357 = vld [vmem:[#allocation2 + $0x90] sm:$0xff]
      %v358 = vld [vmem:[#allocation2 + $0x98] sm:$0xff]
      %v359 = vld [vmem:[#allocation2 + $0xa0] sm:$0xff]
      %v360 = vld [vmem:[#allocation2 + $0xa8] sm:$0xff]
      %v361 = vld [vmem:[#allocation2 + $0xb0] sm:$0xff]
      %v362 = vld [vmem:[#allocation2 + $0xb8] sm:$0xff]
      %v363 = vld [vmem:[#allocation2 + $0xc0] sm:$0xff]
      %v364 = vld [vmem:[#allocation2 + $0xc8] sm:$0xff]
      %v365 = vld [vmem:[#allocation2 + $0xd0] sm:$0xff]
      %v366 = vld [vmem:[#allocation2 + $0xd8] sm:$0xff]
      %v367 = vld [vmem:[#allocation2 + $0xe0] sm:$0xff]
      %v368 = vld [vmem:[#allocation2 + $0xe8] sm:$0xff]
      %v369 = vld [vmem:[#allocation2 + $0xf0] sm:$0xff]
      %v370 = vld [vmem:[#allocation2 + $0xf8] sm:$0xff]
      %v371 = vld [vmem:[#allocation2 + $0x100] sm:$0xff]
      %v372 = vld [vmem:[#allocation2 + $0x108] sm:$0xff]
      %v373 = vld [vmem:[#allocation2 + $0x110] sm:$0xff]
      %v374 = vld [vmem:[#allocation2 + $0x118] sm:$0xff]
      %v375 = vld [vmem:[#allocation2 + $0x120] sm:$0xff]
      %v376 = vld [vmem:[#allocation2 + $0x128] sm:$0xff]
      %v377 = vld [vmem:[#allocation2 + $0x130] sm:$0xff]
      %v378 = vld [vmem:[#allocation2 + $0x138] sm:$0xff]
      %v379 = vld [vmem:[#allocation2 + $0x140] sm:$0xff]
      %v380 = vld [vmem:[#allocation2 + $0x148] sm:$0xff]
      %v381 = vld [vmem:[#allocation2 + $0x150] sm:$0xff]
      %v382 = vld [vmem:[#allocation2 + $0x158] sm:$0xff]
      %v383 = vld [vmem:[#allocation2 + $0x160] sm:$0xff]
      %v384 = vld [vmem:[#allocation2 + $0x168] sm:$0xff]
      %v385 = vld [vmem:[#allocation2 + $0x170] sm:$0xff]
      %v386 = vld [vmem:[#allocation2 + $0x178] sm:$0xff]
      %v387 = vld [vmem:[#allocation2 + $0x180] sm:$0xff]
      %v388 = vld [vmem:[#allocation2 + $0x188] sm:$0xff]
      %v389 = vld [vmem:[#allocation2 + $0x190] sm:$0xff]
      %v390 = vld [vmem:[#allocation2 + $0x198] sm:$0xff]
      %v391 = vld [vmem:[#allocation5] sm:$0xff]
      %v392 = vld [vmem:[#allocation5 + $0x8] sm:$0xff]
      %v393 = vld [vmem:[#allocation5 + $0x10] sm:$0xff]
      %v394 = vld [vmem:[#allocation5 + $0x18] sm:$0xff]
      %v395 = vld [vmem:[#allocation5 + $0x20] sm:$0xff]
      %v396 = vld [vmem:[#allocation5 + $0x28] sm:$0xff]
      %v397 = vld [vmem:[#allocation5 + $0x30] sm:$0xff]
      %v398 = vld [vmem:[#allocation5 + $0x38] sm:$0xff]
      %v399 = vld [vmem:[#allocation5 + $0x40] sm:$0xff]
      %v400 = vld [vmem:[#allocation5 + $0x48] sm:$0xff]
      %v401 = vld [vmem:[#allocation5 + $0x50] sm:$0xff]
      %v402 = vld [vmem:[#allocation5 + $0x58] sm:$0xff]
      %v403 = vld [vmem:[#allocation5 + $0x60] sm:$0xff]
      %v404 = vld [vmem:[#allocation5 + $0x68] sm:$0xff]
      %v405 = vld [vmem:[#allocation5 + $0x70] sm:$0xff]
      %v406 = vld [vmem:[#allocation5 + $0x78] sm:$0xff]
      %v407 = vld [vmem:[#allocation5 + $0x80] sm:$0xff]
      %v408 = vld [vmem:[#allocation5 + $0x88] sm:$0xff]
      %v409 = vld [vmem:[#allocation5 + $0x90] sm:$0xff]
      %v410 = vld [vmem:[#allocation5 + $0x98] sm:$0xff]
      %v411 = vld [vmem:[#allocation5 + $0xa0] sm:$0xff]
      %v412 = vld [vmem:[#allocation5 + $0xa8] sm:$0xff]
      %v413 = vld [vmem:[#allocation5 + $0xb0] sm:$0xff]
      %v414 = vld [vmem:[#allocation5 + $0xb8] sm:$0xff]
      %v415 = vld [vmem:[#allocation5 + $0xc0] sm:$0xff]
      %v416 = vld [vmem:[#allocation5 + $0xc8] sm:$0xff]
      %v417 = vld [vmem:[#allocation5 + $0xd0] sm:$0xff]
      %v418 = vld [vmem:[#allocation5 + $0xd8] sm:$0xff]
      %v419 = vld [vmem:[#allocation5 + $0xe0] sm:$0xff]
      %v420 = vld [vmem:[#allocation5 + $0xe8] sm:$0xff]
      %v421 = vld [vmem:[#allocation5 + $0xf0] sm:$0xff]
      %v422 = vld [vmem:[#allocation5 + $0xf8] sm:$0xff]
      %v423 = vld [vmem:[#allocation5 + $0x100] sm:$0xff]
      %v424 = vld [vmem:[#allocation5 + $0x108] sm:$0xff]
      %v425 = vld [vmem:[#allocation5 + $0x110] sm:$0xff]
      %v426 = vld [vmem:[#allocation5 + $0x118] sm:$0xff]
      %v427 = vld [vmem:[#allocation5 + $0x120] sm:$0xff]
      %v428 = vld [vmem:[#allocation5 + $0x128] sm:$0xff]
      %v429 = vld [vmem:[#allocation5 + $0x130] sm:$0xff]
      %v430 = vld [vmem:[#allocation5 + $0x138] sm:$0xff]
      %v431 = vld [vmem:[#allocation5 + $0x140] sm:$0xff]
      %v432 = vld [vmem:[#allocation5 + $0x148] sm:$0xff]
      %v433 = vld [vmem:[#allocation5 + $0x150] sm:$0xff]
      %v434 = vld [vmem:[#allocation5 + $0x158] sm:$0xff]
      %v435 = vld [vmem:[#allocation5 + $0x160] sm:$0xff]
      %v436 = vld [vmem:[#allocation5 + $0x168] sm:$0xff]
      %v437 = vld [vmem:[#allocation5 + $0x170] sm:$0xff]
      %v438 = vld [vmem:[#allocation5 + $0x178] sm:$0xff]
      %v439 = vld [vmem:[#allocation5 + $0x180] sm:$0xff]
      %v440 = vld [vmem:[#allocation5 + $0x188] sm:$0xff]
      %v441 = vld [vmem:[#allocation5 + $0x190] sm:$0xff]
      %v442 = vld [vmem:[#allocation5 + $0x198] sm:$0xff]
      %v443 = vsub.f32 %v339, %v391
      %v444 = vsub.f32 %v340, %v392
      %v445 = vsub.f32 %v341, %v393
      %v446 = vsub.f32 %v342, %v394
      %v447 = vsub.f32 %v343, %v395
      %v448 = vsub.f32 %v344, %v396
      %v449 = vsub.f32 %v345, %v397
      %v450 = vsub.f32 %v346, %v398
      %v451 = vsub.f32 %v347, %v399
      %v452 = vsub.f32 %v348, %v400
      %v453 = vsub.f32 %v349, %v401
      %v454 = vsub.f32 %v350, %v402
      %v455 = vsub.f32 %v351, %v403
      %v456 = vsub.f32 %v352, %v404
      %v457 = vsub.f32 %v353, %v405
      %v458 = vsub.f32 %v354, %v406
      %v459 = vsub.f32 %v355, %v407
      %v460 = vsub.f32 %v356, %v408
      %v461 = vsub.f32 %v357, %v409
      %v462 = vsub.f32 %v358, %v410
      %v463 = vsub.f32 %v359, %v411
      %v464 = vsub.f32 %v360, %v412
      %v465 = vsub.f32 %v361, %v413
      %v466 = vsub.f32 %v362, %v414
      %v467 = vsub.f32 %v363, %v415
      %v468 = vsub.f32 %v364, %v416
      %v469 = vsub.f32 %v365, %v417
      %v470 = vsub.f32 %v366, %v418
      %v471 = vsub.f32 %v367, %v419
      %v472 = vsub.f32 %v368, %v420
      %v473 = vsub.f32 %v369, %v421
      %v474 = vsub.f32 %v370, %v422
      %v475 = vsub.f32 %v371, %v423
      %v476 = vsub.f32 %v372, %v424
      %v477 = vsub.f32 %v373, %v425
      %v478 = vsub.f32 %v374, %v426
      %v479 = vsub.f32 %v375, %v427
      %v480 = vsub.f32 %v376, %v428
      %v481 = vsub.f32 %v377, %v429
      %v482 = vsub.f32 %v378, %v430
      %v483 = vsub.f32 %v379, %v431
      %v484 = vsub.f32 %v380, %v432
      %v485 = vsub.f32 %v381, %v433
      %v486 = vsub.f32 %v382, %v434
      %v487 = vsub.f32 %v383, %v435
      %v488 = vsub.f32 %v384, %v436
      %v489 = vsub.f32 %v385, %v437
      %v490 = vsub.f32 %v386, %v438
      %v491 = vsub.f32 %v387, %v439
      %v492 = vsub.f32 %v388, %v440
      %v493 = vsub.f32 %v389, %v441
      %v494 = vsub.f32 %v390, %v442
      %v495 = vand.u32 2147483647, %v443
      %v496 = vand.u32 2147483647, %v444
      %v497 = vand.u32 2147483647, %v445
      %v498 = vand.u32 2147483647, %v446
      %v499 = vand.u32 2147483647, %v447
      %v500 = vand.u32 2147483647, %v448
      %v501 = vand.u32 2147483647, %v449
      %v502 = vand.u32 2147483647, %v450
      %v503 = vand.u32 2147483647, %v451
      %v504 = vand.u32 2147483647, %v452
      %v505 = vand.u32 2147483647, %v453
      %v506 = vand.u32 2147483647, %v454
      %v507 = vand.u32 2147483647, %v455
      %v508 = vand.u32 2147483647, %v456
      %v509 = vand.u32 2147483647, %v457
      %v510 = vand.u32 2147483647, %v458
      %v511 = vand.u32 2147483647, %v459
      %v512 = vand.u32 2147483647, %v460
      %v513 = vand.u32 2147483647, %v461
      %v514 = vand.u32 2147483647, %v462
      %v515 = vand.u32 2147483647, %v463
      %v516 = vand.u32 2147483647, %v464
      %v517 = vand.u32 2147483647, %v465
      %v518 = vand.u32 2147483647, %v466
      %v519 = vand.u32 2147483647, %v467
      %v520 = vand.u32 2147483647, %v468
      %v521 = vand.u32 2147483647, %v469
      %v522 = vand.u32 2147483647, %v470
      %v523 = vand.u32 2147483647, %v471
      %v524 = vand.u32 2147483647, %v472
      %v525 = vand.u32 2147483647, %v473
      %v526 = vand.u32 2147483647, %v474
      %v527 = vand.u32 2147483647, %v475
      %v528 = vand.u32 2147483647, %v476
      %v529 = vand.u32 2147483647, %v477
      %v530 = vand.u32 2147483647, %v478
      %v531 = vand.u32 2147483647, %v479
      %v532 = vand.u32 2147483647, %v480
      %v533 = vand.u32 2147483647, %v481
      %v534 = vand.u32 2147483647, %v482
      %v535 = vand.u32 2147483647, %v483
      %v536 = vand.u32 2147483647, %v484
      %v537 = vand.u32 2147483647, %v485
      %v538 = vand.u32 2147483647, %v486
      %v539 = vand.u32 2147483647, %v487
      %v540 = vand.u32 2147483647, %v488
      %v541 = vand.u32 2147483647, %v489
      %v542 = vand.u32 2147483647, %v490
      %v543 = vand.u32 2147483647, %v491
      %v544 = vand.u32 2147483647, %v492
      %v545 = vand.u32 2147483647, %v493
      %v546 = vand.u32 2147483647, %v494
      %v547 = vlaneseq
      %v548 = vshrl.u32 %v547, 7
      %v549 = vadd.s32 %v548, 8
      %v550 = vadd.s32 %v548, 16
      %v551 = vadd.s32 %v548, 24
      %v552 = vadd.s32 %v548, 32
      %v553 = vadd.s32 %v548, 40
      %v554 = vadd.s32 %v548, 48
      %v555 = vadd.s32 %v548, 56
      %v556 = vadd.s32 %v548, 64
      %v557 = vadd.s32 %v548, 72
      %v558 = vadd.s32 %v548, 80
      %v559 = vadd.s32 %v548, 88
      %v560 = vadd.s32 %v548, 96
      %v561 = vadd.s32 %v548, 104
      %v562 = vadd.s32 %v548, 112
      %v563 = vadd.s32 %v548, 120
      %v564 = vadd.s32 %v548, 128
      %v565 = vadd.s32 %v548, 136
      %v566 = vadd.s32 %v548, 144
      %v567 = vadd.s32 %v548, 152
      %v568 = vadd.s32 %v548, 160
      %v569 = vadd.s32 %v548, 168
      %v570 = vadd.s32 %v548, 176
      %v571 = vadd.s32 %v548, 184
      %v572 = vadd.s32 %v548, 192
      %v573 = vadd.s32 %v548, 200
      %v574 = vadd.s32 %v548, 208
      %v575 = vadd.s32 %v548, 216
      %v576 = vadd.s32 %v548, 224
      %v577 = vadd.s32 %v548, 232
      %v578 = vadd.s32 %v548, 240
      %v579 = vadd.s32 %v548, 248
      %v580 = vadd.s32 %v548, 256
      %v581 = vadd.s32 %v548, 264
      %v582 = vadd.s32 %v548, 272
      %v583 = vadd.s32 %v548, 280
      %v584 = vadd.s32 %v548, 288
      %v585 = vadd.s32 %v548, 296
      %v586 = vadd.s32 %v548, 304
      %v587 = vadd.s32 %v548, 312
      %v588 = vadd.s32 %v548, 320
      %v589 = vadd.s32 %v548, 328
      %v590 = vadd.s32 %v548, 336
      %v591 = vadd.s32 %v548, 344
      %v592 = vadd.s32 %v548, 352
      %v593 = vadd.s32 %v548, 360
      %v594 = vadd.s32 %v548, 368
      %v595 = vadd.s32 %v548, 376
      %v596 = vadd.s32 %v548, 384
      %v597 = vadd.s32 %v548, 392
      %v598 = vadd.s32 %v548, 400
      %v599 = vadd.s32 %v548, 408
      %v600 = vstv %s66
      %v601 = vadd.s32 %v600, %v548
      %v602 = vadd.s32 %v600, %v549
      %v603 = vadd.s32 %v600, %v550
      %v604 = vadd.s32 %v600, %v551
      %v605 = vadd.s32 %v600, %v552
      %v606 = vadd.s32 %v600, %v553
      %v607 = vadd.s32 %v600, %v554
      %v608 = vadd.s32 %v600, %v555
      %v609 = vadd.s32 %v600, %v556
      %v610 = vadd.s32 %v600, %v557
      %v611 = vadd.s32 %v600, %v558
      %v612 = vadd.s32 %v600, %v559
      %v613 = vadd.s32 %v600, %v560
      %v614 = vadd.s32 %v600, %v561
      %v615 = vadd.s32 %v600, %v562
      %v616 = vadd.s32 %v600, %v563
      %v617 = vadd.s32 %v600, %v564
      %v618 = vadd.s32 %v600, %v565
      %v619 = vadd.s32 %v600, %v566
      %v620 = vadd.s32 %v600, %v567
      %v621 = vadd.s32 %v600, %v568
      %v622 = vadd.s32 %v600, %v569
      %v623 = vadd.s32 %v600, %v570
      %v624 = vadd.s32 %v600, %v571
      %v625 = vadd.s32 %v600, %v572
      %v626 = vadd.s32 %v600, %v573
      %v627 = vadd.s32 %v600, %v574
      %v628 = vadd.s32 %v600, %v575
      %v629 = vadd.s32 %v600, %v576
      %v630 = vadd.s32 %v600, %v577
      %v631 = vadd.s32 %v600, %v578
      %v632 = vadd.s32 %v600, %v579
      %v633 = vadd.s32 %v600, %v580
      %v634 = vadd.s32 %v600, %v581
      %v635 = vadd.s32 %v600, %v582
      %v636 = vadd.s32 %v600, %v583
      %v637 = vadd.s32 %v600, %v584
      %v638 = vadd.s32 %v600, %v585
      %v639 = vadd.s32 %v600, %v586
      %v640 = vadd.s32 %v600, %v587
      %v641 = vadd.s32 %v600, %v588
      %v642 = vadd.s32 %v600, %v589
      %v643 = vadd.s32 %v600, %v590
      %v644 = vadd.s32 %v600, %v591
      %v645 = vadd.s32 %v600, %v592
      %v646 = vadd.s32 %v600, %v593
      %v647 = vadd.s32 %v600, %v594
      %v648 = vadd.s32 %v600, %v595
      %v649 = vadd.s32 %v600, %v596
      %v650 = vadd.s32 %v600, %v597
      %v651 = vadd.s32 %v600, %v598
      %v652 = vadd.s32 %v600, %v599
      %vm653 = vcmp.lt.s32.totalorder %v601, 410
      %vm654 = vcmp.lt.s32.totalorder %v602, 410
      %vm655 = vcmp.lt.s32.totalorder %v603, 410
      %vm656 = vcmp.lt.s32.totalorder %v604, 410
      %vm657 = vcmp.lt.s32.totalorder %v605, 410
      %vm658 = vcmp.lt.s32.totalorder %v606, 410
      %vm659 = vcmp.lt.s32.totalorder %v607, 410
      %vm660 = vcmp.lt.s32.totalorder %v608, 410
      %vm661 = vcmp.lt.s32.totalorder %v609, 410
      %vm662 = vcmp.lt.s32.totalorder %v610, 410
      %vm663 = vcmp.lt.s32.totalorder %v611, 410
      %vm664 = vcmp.lt.s32.totalorder %v612, 410
      %vm665 = vcmp.lt.s32.totalorder %v613, 410
      %vm666 = vcmp.lt.s32.totalorder %v614, 410
      %vm667 = vcmp.lt.s32.totalorder %v615, 410
      %vm668 = vcmp.lt.s32.totalorder %v616, 410
      %vm669 = vcmp.lt.s32.totalorder %v617, 410
      %vm670 = vcmp.lt.s32.totalorder %v618, 410
      %vm671 = vcmp.lt.s32.totalorder %v619, 410
      %vm672 = vcmp.lt.s32.totalorder %v620, 410
      %vm673 = vcmp.lt.s32.totalorder %v621, 410
      %vm674 = vcmp.lt.s32.totalorder %v622, 410
      %vm675 = vcmp.lt.s32.totalorder %v623, 410
      %vm676 = vcmp.lt.s32.totalorder %v624, 410
      %vm677 = vcmp.lt.s32.totalorder %v625, 410
      %vm678 = vcmp.lt.s32.totalorder %v626, 410
      %vm679 = vcmp.lt.s32.totalorder %v627, 410
      %vm680 = vcmp.lt.s32.totalorder %v628, 410
      %vm681 = vcmp.lt.s32.totalorder %v629, 410
      %vm682 = vcmp.lt.s32.totalorder %v630, 410
      %vm683 = vcmp.lt.s32.totalorder %v631, 410
      %vm684 = vcmp.lt.s32.totalorder %v632, 410
      %vm685 = vcmp.lt.s32.totalorder %v633, 410
      %vm686 = vcmp.lt.s32.totalorder %v634, 410
      %vm687 = vcmp.lt.s32.totalorder %v635, 410
      %vm688 = vcmp.lt.s32.totalorder %v636, 410
      %vm689 = vcmp.lt.s32.totalorder %v637, 410
      %vm690 = vcmp.lt.s32.totalorder %v638, 410
      %vm691 = vcmp.lt.s32.totalorder %v639, 410
      %vm692 = vcmp.lt.s32.totalorder %v640, 410
      %vm693 = vcmp.lt.s32.totalorder %v641, 410
      %vm694 = vcmp.lt.s32.totalorder %v642, 410
      %vm695 = vcmp.lt.s32.totalorder %v643, 410
      %vm696 = vcmp.lt.s32.totalorder %v644, 410
      %vm697 = vcmp.lt.s32.totalorder %v645, 410
      %vm698 = vcmp.lt.s32.totalorder %v646, 410
      %vm699 = vcmp.lt.s32.totalorder %v647, 410
      %vm700 = vcmp.lt.s32.totalorder %v648, 410
      %vm701 = vcmp.lt.s32.totalorder %v649, 410
      %vm702 = vcmp.lt.s32.totalorder %v650, 410
      %vm703 = vcmp.lt.s32.totalorder %v651, 410
      %vm704 = vcmp.lt.s32.totalorder %v652, 410
      %v705 = vsel %vm653, %v495, 0.0
      %v706 = vsel %vm654, %v496, 0.0
      %v707 = vsel %vm655, %v497, 0.0
      %v708 = vsel %vm656, %v498, 0.0
      %v709 = vsel %vm657, %v499, 0.0
      %v710 = vsel %vm658, %v500, 0.0
      %v711 = vsel %vm659, %v501, 0.0
      %v712 = vsel %vm660, %v502, 0.0
      %v713 = vsel %vm661, %v503, 0.0
      %v714 = vsel %vm662, %v504, 0.0
      %v715 = vsel %vm663, %v505, 0.0
      %v716 = vsel %vm664, %v506, 0.0
      %v717 = vsel %vm665, %v507, 0.0
      %v718 = vsel %vm666, %v508, 0.0
      %v719 = vsel %vm667, %v509, 0.0
      %v720 = vsel %vm668, %v510, 0.0
      %v721 = vsel %vm669, %v511, 0.0
      %v722 = vsel %vm670, %v512, 0.0
      %v723 = vsel %vm671, %v513, 0.0
      %v724 = vsel %vm672, %v514, 0.0
      %v725 = vsel %vm673, %v515, 0.0
      %v726 = vsel %vm674, %v516, 0.0
      %v727 = vsel %vm675, %v517, 0.0
      %v728 = vsel %vm676, %v518, 0.0
      %v729 = vsel %vm677, %v519, 0.0
      %v730 = vsel %vm678, %v520, 0.0
      %v731 = vsel %vm679, %v521, 0.0
      %v732 = vsel %vm680, %v522, 0.0
      %v733 = vsel %vm681, %v523, 0.0
      %v734 = vsel %vm682, %v524, 0.0
      %v735 = vsel %vm683, %v525, 0.0
      %v736 = vsel %vm684, %v526, 0.0
      %v737 = vsel %vm685, %v527, 0.0
      %v738 = vsel %vm686, %v528, 0.0
      %v739 = vsel %vm687, %v529, 0.0
      %v740 = vsel %vm688, %v530, 0.0
      %v741 = vsel %vm689, %v531, 0.0
      %v742 = vsel %vm690, %v532, 0.0
      %v743 = vsel %vm691, %v533, 0.0
      %v744 = vsel %vm692, %v534, 0.0
      %v745 = vsel %vm693, %v535, 0.0
      %v746 = vsel %vm694, %v536, 0.0
      %v747 = vsel %vm695, %v537, 0.0
      %v748 = vsel %vm696, %v538, 0.0
      %v749 = vsel %vm697, %v539, 0.0
      %v750 = vsel %vm698, %v540, 0.0
      %v751 = vsel %vm699, %v541, 0.0
      %v752 = vsel %vm700, %v542, 0.0
      %v753 = vsel %vm701, %v543, 0.0
      %v754 = vsel %vm702, %v544, 0.0
      %v755 = vsel %vm703, %v545, 0.0
      %v756 = vsel %vm704, %v546, 0.0
      %v757 = vadd.f32 %v705, %v706
      %v758 = vadd.f32 %v757, %v707
      %v759 = vadd.f32 %v758, %v708
      %v760 = vadd.f32 %v759, %v709
      %v761 = vadd.f32 %v760, %v710
      %v762 = vadd.f32 %v761, %v711
      %v763 = vadd.f32 %v762, %v712
      %v764 = vadd.f32 %v763, %v713
      %v765 = vadd.f32 %v764, %v714
      %v766 = vadd.f32 %v765, %v715
      %v767 = vadd.f32 %v766, %v716
      %v768 = vadd.f32 %v767, %v717
      %v769 = vadd.f32 %v768, %v718
      %v770 = vadd.f32 %v769, %v719
      %v771 = vadd.f32 %v770, %v720
      %v772 = vadd.f32 %v771, %v721
      %v773 = vadd.f32 %v772, %v722
      %v774 = vadd.f32 %v773, %v723
      %v775 = vadd.f32 %v774, %v724
      %v776 = vadd.f32 %v775, %v725
      %v777 = vadd.f32 %v776, %v726
      %v778 = vadd.f32 %v777, %v727
      %v779 = vadd.f32 %v778, %v728
      %v780 = vadd.f32 %v779, %v729
      %v781 = vadd.f32 %v780, %v730
      %v782 = vadd.f32 %v781, %v731
      %v783 = vadd.f32 %v782, %v732
      %v784 = vadd.f32 %v783, %v733
      %v785 = vadd.f32 %v784, %v734
      %v786 = vadd.f32 %v785, %v735
      %v787 = vadd.f32 %v786, %v736
      %v788 = vadd.f32 %v787, %v737
      %v789 = vadd.f32 %v788, %v738
      %v790 = vadd.f32 %v789, %v739
      %v791 = vadd.f32 %v790, %v740
      %v792 = vadd.f32 %v791, %v741
      %v793 = vadd.f32 %v792, %v742
      %v794 = vadd.f32 %v793, %v743
      %v795 = vadd.f32 %v794, %v744
      %v796 = vadd.f32 %v795, %v745
      %v797 = vadd.f32 %v796, %v746
      %v798 = vadd.f32 %v797, %v747
      %v799 = vadd.f32 %v798, %v748
      %v800 = vadd.f32 %v799, %v749
      %v801 = vadd.f32 %v800, %v750
      %v802 = vadd.f32 %v801, %v751
      %v803 = vadd.f32 %v802, %v752
      %v804 = vadd.f32 %v803, %v753
      %v805 = vadd.f32 %v804, %v754
      %v806 = vadd.f32 %v805, %v755
      %v807 = vadd.f32 %v806, %v756
      %v808 = vadd.f32 %v338, %v807
      %809 = vst [vmem:[#allocation7] sm:$0xff] %v808
    $region29: #{tpu_custom_call.1} parent=1 // pred_fallthru
      _
    // Predicated region
    $region30: #{tpu_custom_call.1} parent=1 // pred_check
      _
    $region31: #{tpu_custom_call.1} parent=1 // pred_check_branch
      %811 = sbr.rel (0) target = $region33
    $region32: #{tpu_custom_call.1} parent=1 // pred_region
      %s813 = ssub.s32 128, 128
      %814 = vsyncadd [#allocation4], %s813
      %s816 = sshll.u32 [#allocation7], 4
      %s817 = int_to_ptr.vmem [resolvable:$true] %s816
      %819 = dma.vmem_to_hbm [thread:$0]  %s817, 128, %s2, [#allocation4]
    $region33: #{tpu_custom_call.1} parent=1 // pred_fallthru
      _
    // Predicated region
    $region34: #{tpu_custom_call.1} parent=1 // pred_check
      _
    $region35: #{tpu_custom_call.1} parent=1 // pred_check_branch
      %821 = sbr.rel (0) target = $region37
    $region36: #{tpu_custom_call.1} parent=1 // pred_region
      %822 = dma.done [#allocation4], 128
    $region37: #{tpu_custom_call.1} parent=1 // pred_fallthru
      _
    %823 = vsyncpa [#allocation3], 1
    %824 = vsyncpa [#allocation6], 1
    %825 = vsyncpa [#allocation4], 1

</llo_original>
